<compile_context>
chip_gen: v7x
topology: tpu7x:2x2x1
jax: 0.10.0
libtpu: 0.0.40
codegen_flags: <defaults>
</compile_context>

<pallas_src>
import math

import jax
import jax.numpy as jnp
from jax.experimental import pallas as pl
from jax.experimental.pallas import tpu as pltpu

_EPS = 1e-5


def _gate_mlp_kernel(top_ref, w1_ref, g1_ref, be1_ref, w2_ref, g2_ref,
                     be2_ref, gate_ref):
    """One-shot fused gate MLP: (B, n) top values -> (B, 1) sigmoid gate."""
    x = top_ref[...].astype(jnp.float32)                               # (B, n)

    # Linear(n, n) on the MXU.  Bias b1 omitted: training-mode BatchNorm
    # subtracts the batch mean right after, so it cancels exactly.
    h = jnp.dot(x, w1_ref[...], preferred_element_type=jnp.float32)    # (B, n)

    # BatchNorm1d(n), training semantics (batch stats, biased variance).
    mu = jnp.mean(h, axis=0, keepdims=True)                            # (1, n)
    var = jnp.mean((h - mu) ** 2, axis=0, keepdims=True)               # (1, n)
    h = (h - mu) * jax.lax.rsqrt(var + _EPS) * g1_ref[...] + be1_ref[...]

    # ReLU.
    h = jnp.maximum(h, 0.0)

    # Linear(n, 1) as elementwise multiply + lane reduction (XLU slot; an
    # (n,1)-output MXU matmul would waste the MXU).  Bias b2 cancels below.
    z = jnp.sum(h * w2_ref[...], axis=1, keepdims=True)                # (B, 1)

    # BatchNorm1d(1), training semantics.
    mu2 = jnp.mean(z, axis=0, keepdims=True)                           # (1, 1)
    var2 = jnp.mean((z - mu2) ** 2, axis=0, keepdims=True)             # (1, 1)
    z = (z - mu2) * jax.lax.rsqrt(var2 + _EPS) * g2_ref[...] + be2_ref[...]

    gate_ref[...] = jax.nn.sigmoid(z)                                  # (B, 1)


def _scale_kernel(gate_ref, attn_ref, out_ref):
    """Epilogue: one (B, tile_l) slab of attn_map scaled by the (B, 1) gate."""
    out_ref[...] = (gate_ref[...] * attn_ref[...]).astype(out_ref.dtype)


def _round_up(x, m):
    return (x + m - 1) // m * m


def _pick_tile_l(B, L, itemsize, *, per_buf_bytes=4 << 20, min_grid=4):
    """Tile width along L (multiple of 128).

    Capped so one (B, tile_l) buffer is ~per_buf_bytes (default 4 MiB: with
    in+out tiles x 2 pipeline buffers that's ~16 MiB of VMEM), and so the L
    grid keeps >= min_grid steps when L allows it (v7x megacore sharding and
    pipeline overlap).
    """
    l128 = _round_up(L, 128)
    vmem_cap = max(128, per_buf_bytes // (B * itemsize) // 128 * 128)
    grid_cap = max(128, (l128 // min_grid) // 128 * 128)
    return int(min(vmem_cap, grid_cap, l128))


def gate_attn_map(attn_map, w1, g1, be1, w2, g2, be2, *,
                  per_buf_bytes=4 << 20, min_grid=4):
    """attn_map: (B, L). Returns sigmoid(gate_mlp(top_n(attn_map))) * attn_map.

    w1      : (n, n)  Linear(n,n) weight, pre-transposed so h = x @ w1
    g1, be1 : (1, n)  BatchNorm1d(n) gamma / beta
    w2      : (1, n)  Linear(n,1) weight row
    g2, be2 : (1, 1)  BatchNorm1d(1) gamma / beta
    (Linear biases b1 / b2 are mathematically cancelled by the training-mode
    batch norms, so they are not kernel inputs.  Not valid for eval-mode
    running-stats BatchNorm.)
    """
    B, L = attn_map.shape
    n = w1.shape[0]
    assert L >= n, "attn_map second dim must be >= n"
    assert B >= 2, "training-mode BatchNorm needs batch size > 1"

    # --- Prologue (XLA): descending top-n selection.  lax.top_k returns
    # values already sorted descending and avoids a full per-row sort.
    # TODO(synk): no native Pallas/Mosaic sort / top-k on TPU.
    top = jax.lax.top_k(attn_map, n)[0]                                # (B, n)

    # --- Kernel 1: fused gate MLP, one shot, everything VMEM resident.
    gate = pl.pallas_call(
        _gate_mlp_kernel,
        out_shape=jax.ShapeDtypeStruct((B, 1), jnp.float32),
    )(top, w1, g1, be1, w2, g2, be2)

    # --- Kernel 2: L-tiled broadcast multiply (pure HBM-bandwidth bound).
    itemsize = jnp.dtype(attn_map.dtype).itemsize
    tile_l = _pick_tile_l(B, L, itemsize,
                          per_buf_bytes=per_buf_bytes, min_grid=min_grid)
    l_pad = _round_up(L, tile_l)
    attn_in = attn_map
    if l_pad != L:
        # Pad L up to a tile multiple so every block is full (the padded tail
        # is sliced off below).  Keeps big pipelined tiles for awkward L and
        # avoids a single giant (B, L) block blowing VMEM.
        attn_in = jnp.pad(attn_map, ((0, 0), (0, l_pad - L)))
    grid = (l_pad // tile_l,)

    # in + out tiles x 2 pipeline buffers, plus the tiny gate const and slack.
    tile_bytes = B * tile_l * itemsize
    vmem_limit = int(min(max(32 << 20, 4 * tile_bytes + (4 << 20)), 48 << 20))

    out = pl.pallas_call(
        _scale_kernel,
        out_shape=jax.ShapeDtypeStruct((B, l_pad), attn_map.dtype),
        grid=grid,
        in_specs=[
            pl.BlockSpec((B, 1), lambda j: (0, 0)),        # gate (resident)
            pl.BlockSpec((B, tile_l), lambda j: (0, j)),   # attn_map tile
        ],
        out_specs=pl.BlockSpec((B, tile_l), lambda j: (0, j)),
        # attn_map (input index 1) has the same shape/dtype/blocking as the
        # output and is dead after this op -> alias to drop one HBM buffer
        # when the caller donates it (XLA inserts a copy otherwise, so safe).
        input_output_aliases={1: 0},
        compiler_params=pltpu.CompilerParams(
            dimension_semantics=("parallel",),
            vmem_limit_bytes=vmem_limit),
    )(gate, attn_in)

    return out[:, :L] if l_pad != L else out


def _reference(attn_map, w1, b1, g1, be1, w2, b2, g2, be2):
    """Pure-JAX mirror of the PyTorch module (training-mode BatchNorm),
    *including* the Linear biases that the kernels drop (they cancel)."""
    n = w1.shape[0]
    top = jnp.sort(attn_map, axis=1)[:, ::-1][:, :n]
    h = jnp.dot(top, w1, precision=jax.lax.Precision.HIGHEST) + b1
    mu = jnp.mean(h, axis=0, keepdims=True)
    var = jnp.mean((h - mu) ** 2, axis=0, keepdims=True)
    h = (h - mu) / jnp.sqrt(var + _EPS) * g1 + be1
    h = jnp.maximum(h, 0.0)
    z = jnp.sum(h * w2, axis=1, keepdims=True) + b2
    mu2 = jnp.mean(z, axis=0, keepdims=True)
    var2 = jnp.mean((z - mu2) ** 2, axis=0, keepdims=True)
    z = (z - mu2) / jnp.sqrt(var2 + _EPS) * g2 + be2
    return jax.nn.sigmoid(z) * attn_map


if __name__ == "__main__":
    B, n = 8, 128  # gate operates on top-n = 128 values per row

    key = jax.random.PRNGKey(0)
    ks = jax.random.split(key, 8)

    bound = 1.0 / math.sqrt(n)
    # Linear(n, n): stored pre-transposed so the kernel computes x @ w1.
    w1 = jax.random.uniform(ks[1], (n, n), jnp.float32, -bound, bound)
    b1 = jax.random.uniform(ks[2], (1, n), jnp.float32, -bound, bound)
    # BatchNorm1d(n) affine params (non-trivial to exercise the math).
    g1 = 1.0 + 0.1 * jax.random.normal(ks[3], (1, n), jnp.float32)
    be1 = 0.1 * jax.random.normal(ks[4], (1, n), jnp.float32)
    # Linear(n, 1): weight row (1, n) and bias.
    w2 = jax.random.uniform(ks[5], (1, n), jnp.float32, -bound, bound)
    b2 = jax.random.uniform(ks[6], (), jnp.float32, -bound, bound)
    # BatchNorm1d(1) affine params.
    g2 = jnp.full((1, 1), 1.05, jnp.float32)
    be2 = jnp.full((1, 1), 0.02, jnp.float32)

    # Case 1: 128-aligned L -> 4-step parallel grid, aliased in/out.
    attn_a = jax.random.uniform(ks[0], (B, 1024), jnp.float32)
    out_a = gate_attn_map(attn_a, w1, g1, be1, w2, g2, be2)
    jax.block_until_ready(out_a)
    ref_a = _reference(attn_a, w1, b1, g1, be1, w2, b2, g2, be2)
    assert out_a.shape == attn_a.shape
    err_a = float(jnp.max(jnp.abs(out_a - ref_a)))
    assert err_a < 1e-3, f"aligned-L mismatch vs JAX reference: max|diff|={err_a}"

    # Case 2: awkward L (not a multiple of 128) -> padded tiling path.
    attn_b = jax.random.uniform(ks[7], (B, 600), jnp.float32)
    out_b = gate_attn_map(attn_b, w1, g1, be1, w2, g2, be2)
    jax.block_until_ready(out_b)
    ref_b = _reference(attn_b, w1, b1, g1, be1, w2, b2, g2, be2)
    assert out_b.shape == attn_b.shape
    err_b = float(jnp.max(jnp.abs(out_b - ref_b)))
    assert err_b < 1e-3, f"awkward-L mismatch vs JAX reference: max|diff|={err_b}"

    print("KERNEL_OK")
</pallas_src>

<mosaic_0001>
module attributes {stable_mosaic.version = 11 : i64} {
  func.func @_gate_mlp_kernel(%arg0: memref<8x128xf32, #tpu.memory_space<vmem>>, %arg1: memref<128x128xf32, #tpu.memory_space<vmem>>, %arg2: memref<1x128xf32, #tpu.memory_space<vmem>>, %arg3: memref<1x128xf32, #tpu.memory_space<vmem>>, %arg4: memref<1x128xf32, #tpu.memory_space<vmem>>, %arg5: memref<1x1xf32, #tpu.memory_space<vmem>>, %arg6: memref<1x1xf32, #tpu.memory_space<vmem>>, %arg7: memref<8x1xf32, #tpu.memory_space<vmem>>) attributes {dimension_semantics = [], scalar_prefetch = 0 : i64, scratch_operands = 0 : i64, tpu.core_type = #tpu.core_type<tc>} {
    %c0 = arith.constant 0 : index
    %c0_0 = arith.constant 0 : index
    %0 = vector.load %arg0[%c0, %c0_0] : memref<8x128xf32, #tpu.memory_space<vmem>>, vector<8x128xf32>
    %c0_1 = arith.constant 0 : index
    %c0_2 = arith.constant 0 : index
    %1 = vector.load %arg1[%c0_1, %c0_2] : memref<128x128xf32, #tpu.memory_space<vmem>>, vector<128x128xf32>
    %cst = arith.constant dense<0.000000e+00> : vector<8x128xf32>
    %2 = tpu.matmul %0, %1, %cst {dimension_numbers = #tpu.dot_dimension_numbers<[1], [0], [0], [1], [0, 0, 1, 1], [], []>} : vector<8x128xf32>, vector<128x128xf32>, vector<8x128xf32> -> vector<8x128xf32>
    %cst_3 = arith.constant dense<0.000000e+00> : vector<128xf32>
    %3 = vector.multi_reduction <add>, %2, %cst_3 [0] : vector<8x128xf32> to vector<128xf32>
    %4 = vector.shape_cast %3 : vector<128xf32> to vector<1x128xf32>
    %cst_4 = arith.constant 8.000000e+00 : f32
    %5 = vector.broadcast %cst_4 : f32 to vector<1x128xf32>
    %6 = arith.divf %4, %5 : vector<1x128xf32>
    %7 = vector.broadcast %6 : vector<1x128xf32> to vector<8x128xf32>
    %8 = arith.subf %2, %7 : vector<8x128xf32>
    %9 = arith.mulf %8, %8 : vector<8x128xf32>
    %cst_5 = arith.constant dense<0.000000e+00> : vector<128xf32>
    %10 = vector.multi_reduction <add>, %9, %cst_5 [0] : vector<8x128xf32> to vector<128xf32>
    %11 = vector.shape_cast %10 : vector<128xf32> to vector<1x128xf32>
    %cst_6 = arith.constant 8.000000e+00 : f32
    %12 = vector.broadcast %cst_6 : f32 to vector<1x128xf32>
    %13 = arith.divf %11, %12 : vector<1x128xf32>
    %14 = vector.broadcast %6 : vector<1x128xf32> to vector<8x128xf32>
    %15 = arith.subf %2, %14 : vector<8x128xf32>
    %cst_7 = arith.constant 9.99999974E-6 : f32
    %16 = vector.broadcast %cst_7 : f32 to vector<1x128xf32>
    %17 = arith.addf %13, %16 : vector<1x128xf32>
    %18 = math.rsqrt %17 : vector<1x128xf32>
    %19 = vector.broadcast %18 : vector<1x128xf32> to vector<8x128xf32>
    %20 = arith.mulf %15, %19 : vector<8x128xf32>
    %c0_8 = arith.constant 0 : index
    %c0_9 = arith.constant 0 : index
    %21 = vector.load %arg2[%c0_8, %c0_9] : memref<1x128xf32, #tpu.memory_space<vmem>>, vector<1x128xf32>
    %22 = vector.broadcast %21 : vector<1x128xf32> to vector<8x128xf32>
    %23 = arith.mulf %20, %22 : vector<8x128xf32>
    %c0_10 = arith.constant 0 : index
    %c0_11 = arith.constant 0 : index
    %24 = vector.load %arg3[%c0_10, %c0_11] : memref<1x128xf32, #tpu.memory_space<vmem>>, vector<1x128xf32>
    %25 = vector.broadcast %24 : vector<1x128xf32> to vector<8x128xf32>
    %26 = arith.addf %23, %25 : vector<8x128xf32>
    %cst_12 = arith.constant 0.000000e+00 : f32
    %27 = vector.broadcast %cst_12 : f32 to vector<8x128xf32>
    %28 = arith.maximumf %26, %27 : vector<8x128xf32>
    %c0_13 = arith.constant 0 : index
    %c0_14 = arith.constant 0 : index
    %29 = vector.load %arg4[%c0_13, %c0_14] : memref<1x128xf32, #tpu.memory_space<vmem>>, vector<1x128xf32>
    %30 = vector.broadcast %29 : vector<1x128xf32> to vector<8x128xf32>
    %31 = arith.mulf %28, %30 : vector<8x128xf32>
    %cst_15 = arith.constant dense<0.000000e+00> : vector<8xf32>
    %32 = vector.multi_reduction <add>, %31, %cst_15 [1] : vector<8x128xf32> to vector<8xf32>
    %33 = vector.shape_cast %32 : vector<8xf32> to vector<8x1xf32>
    %cst_16 = arith.constant dense<0.000000e+00> : vector<1xf32>
    %34 = vector.multi_reduction <add>, %33, %cst_16 [0] : vector<8x1xf32> to vector<1xf32>
    %35 = vector.shape_cast %34 : vector<1xf32> to vector<1x1xf32>
    %cst_17 = arith.constant 8.000000e+00 : f32
    %36 = vector.broadcast %cst_17 : f32 to vector<1x1xf32>
    %37 = arith.divf %35, %36 : vector<1x1xf32>
    %38 = vector.broadcast %37 : vector<1x1xf32> to vector<8x1xf32>
    %39 = arith.subf %33, %38 : vector<8x1xf32>
    %40 = arith.mulf %39, %39 : vector<8x1xf32>
    %cst_18 = arith.constant dense<0.000000e+00> : vector<1xf32>
    %41 = vector.multi_reduction <add>, %40, %cst_18 [0] : vector<8x1xf32> to vector<1xf32>
    %42 = vector.shape_cast %41 : vector<1xf32> to vector<1x1xf32>
    %cst_19 = arith.constant 8.000000e+00 : f32
    %43 = vector.broadcast %cst_19 : f32 to vector<1x1xf32>
    %44 = arith.divf %42, %43 : vector<1x1xf32>
    %45 = vector.broadcast %37 : vector<1x1xf32> to vector<8x1xf32>
    %46 = arith.subf %33, %45 : vector<8x1xf32>
    %cst_20 = arith.constant 9.99999974E-6 : f32
    %47 = vector.broadcast %cst_20 : f32 to vector<1x1xf32>
    %48 = arith.addf %44, %47 : vector<1x1xf32>
    %49 = math.rsqrt %48 : vector<1x1xf32>
    %50 = vector.broadcast %49 : vector<1x1xf32> to vector<8x1xf32>
    %51 = arith.mulf %46, %50 : vector<8x1xf32>
    %c0_21 = arith.constant 0 : index
    %c0_22 = arith.constant 0 : index
    %52 = vector.load %arg5[%c0_21, %c0_22] : memref<1x1xf32, #tpu.memory_space<vmem>>, vector<1x1xf32>
    %53 = vector.broadcast %52 : vector<1x1xf32> to vector<8x1xf32>
    %54 = arith.mulf %51, %53 : vector<8x1xf32>
    %c0_23 = arith.constant 0 : index
    %c0_24 = arith.constant 0 : index
    %55 = vector.load %arg6[%c0_23, %c0_24] : memref<1x1xf32, #tpu.memory_space<vmem>>, vector<1x1xf32>
    %56 = vector.broadcast %55 : vector<1x1xf32> to vector<8x1xf32>
    %57 = arith.addf %54, %56 : vector<8x1xf32>
    %58 = arith.negf %57 : vector<8x1xf32>
    %59 = math.exp %58 : vector<8x1xf32>
    %cst_25 = arith.constant 1.000000e+00 : f32
    %60 = vector.broadcast %cst_25 : f32 to vector<8x1xf32>
    %61 = arith.addf %60, %59 : vector<8x1xf32>
    %62 = arith.divf %60, %61 : vector<8x1xf32>
    %c0_26 = arith.constant 0 : index
    %c0_27 = arith.constant 0 : index
    %63 = vector.load %arg7[%c0_26, %c0_27] : memref<8x1xf32, #tpu.memory_space<vmem>>, vector<8x1xf32>
    tpu.vector_store %arg7[%c0_26, %c0_27], %62 {strides = array<i32>} : memref<8x1xf32, #tpu.memory_space<vmem>>, vector<8x1xf32>,
    return
  }
}

</mosaic_0001>

<llo_original>
// kernel: tpu_custom_call.1
$region0: #{tpu_custom_call.1}
  #allocation0 [shape = 'u32[]', space=smem, size = 0x4, offset = 0x4, fixed_abs, tag = 'smem constant byte address 0x4 - core index']
  #allocation1 [shape = 'u32[144,128]{1,0:T(1,128)}', space=vmem, size = 0x12000, scoped, tag = 'internal scratch']
  #allocation2 [shape = 'f32[1,1]{1,0:T(1,128)S(1)}', space=vmem, size = 0x200, scoped, tag = 'scoped memory for tpu_custom_call.1']
  #allocation3 [shape = 'f32[1,1]{1,0:T(1,128)S(1)}', space=vmem, size = 0x200, scoped, tag = 'scoped memory for tpu_custom_call.1']
  %s0 = inlined_call_operand.hbm [shape: f32[8,128], index: 0, kind: input, shape index: {}]
  %s1 = inlined_call_operand.hbm [shape: f32[128,128], index: 1, kind: input, shape index: {}]
  %s2 = inlined_call_operand.vmem [shape: f32[1,128], index: 2, kind: input, shape index: {}]
  %s3 = inlined_call_operand.vmem [shape: f32[1,128], index: 3, kind: input, shape index: {}]
  %s4 = inlined_call_operand.vmem [shape: f32[1,128], index: 4, kind: input, shape index: {}]
  %s5 = inlined_call_operand.<no memory space> [shape: f32[1,1], index: 5, kind: input, shape index: {}]
  %s6 = inlined_call_operand.<no memory space> [shape: f32[1,1], index: 6, kind: input, shape index: {}]
  %s7 = inlined_call_operand.vmem [shape: f32[8,1], index: 7, kind: output, shape index: {}]
  %s8 = sld [smem:[#allocation0]]
  $region46: #{tpu_custom_call.1} parent=0
    _
  %s10 = ssub.s32 1, %s8
  %s11 = scalar_select 0, %s10, %s8
  %v12 = vstv %s5
  %13 = vst [vmem:[#allocation2] sm:$0x1] %v12
  %v14 = vstv %s6
  %15 = vst [vmem:[#allocation3] sm:$0x1] %v14
  $region1: #{tpu_custom_call.1} parent=0
    #allocation4 [shape = 'u8[4096]{0}', space=vmem, size = 0x1000, scoped, tag = 'input window, operand 0, single buffered']
    #allocation5 [shape = 's32[1]{0}', space=sflag, size = 0x4, scoped, tag = 'scoped memory for tpu_custom_call.1']
    #allocation6 [shape = 'u8[65536]{0}', space=vmem, size = 0x10000, scoped, tag = 'input window, operand 1, single buffered']
    #allocation7 [shape = 's32[1]{0}', space=sflag, size = 0x4, scoped, tag = 'scoped memory for tpu_custom_call.1']
    %16 = vsyncpa [#allocation5], 0
    %17 = vsyncpa [#allocation7], 0
    // Predicated region
    $region2: #{tpu_custom_call.1} parent=1 // pred_check
      _
    $region3: #{tpu_custom_call.1} parent=1 // pred_check_branch
      %19 = sbr.rel (0) target = $region5
    $region4: #{tpu_custom_call.1} parent=1 // pred_region
      %s21 = ssub.s32 128, 128
      %22 = vsyncadd [#allocation5], %s21
      %s24 = sshll.u32 [#allocation4], 4
      %s25 = int_to_ptr.vmem [resolvable:$true] %s24
      %27 = dma.hbm_to_vmem [thread:$0]  %s0, 128, %s25, [#allocation5]
    $region5: #{tpu_custom_call.1} parent=1 // pred_fallthru
      _
    // Predicated region
    $region6: #{tpu_custom_call.1} parent=1 // pred_check
      _
    $region7: #{tpu_custom_call.1} parent=1 // pred_check_branch
      %29 = sbr.rel (0) target = $region9
    $region8: #{tpu_custom_call.1} parent=1 // pred_region
      %s31 = ssub.s32 2048, 2048
      %32 = vsyncadd [#allocation7], %s31
      %s33 = sshll.u32 [#allocation6], 4
      %s34 = int_to_ptr.vmem [resolvable:$true] %s33
      %39 = dma.hbm_to_vmem [thread:$0]  %s1, 2048, %s34, [#allocation7], 128, 128, 8
    $region9: #{tpu_custom_call.1} parent=1 // pred_fallthru
      _
    // Predicated region
    $region10: #{tpu_custom_call.1} parent=1 // pred_check
      _
    $region11: #{tpu_custom_call.1} parent=1 // pred_check_branch
      %41 = sbr.rel (0) target = $region13
    $region12: #{tpu_custom_call.1} parent=1 // pred_region
      _
    $region13: #{tpu_custom_call.1} parent=1 // pred_fallthru
      _
    // Predicated region
    $region14: #{tpu_custom_call.1} parent=1 // pred_check
      _
    $region15: #{tpu_custom_call.1} parent=1 // pred_check_branch
      %43 = sbr.rel (0) target = $region17
    $region16: #{tpu_custom_call.1} parent=1 // pred_region
      _
    $region17: #{tpu_custom_call.1} parent=1 // pred_fallthru
      _
    // Predicated region
    $region18: #{tpu_custom_call.1} parent=1 // pred_check
      _
    $region19: #{tpu_custom_call.1} parent=1 // pred_check_branch
      %45 = sbr.rel (0) target = $region21
    $region20: #{tpu_custom_call.1} parent=1 // pred_region
      _
    $region21: #{tpu_custom_call.1} parent=1 // pred_fallthru
      _
    // Predicated region
    $region22: #{tpu_custom_call.1} parent=1 // pred_check
      _
    $region23: #{tpu_custom_call.1} parent=1 // pred_check_branch
      %47 = sbr.rel (0) target = $region25
    $region24: #{tpu_custom_call.1} parent=1 // pred_region
      _
    $region25: #{tpu_custom_call.1} parent=1 // pred_fallthru
      _
    // Predicated region
    $region26: #{tpu_custom_call.1} parent=1 // pred_check
      _
    $region27: #{tpu_custom_call.1} parent=1 // pred_check_branch
      %49 = sbr.rel (0) target = $region29
    $region28: #{tpu_custom_call.1} parent=1 // pred_region
      _
    $region29: #{tpu_custom_call.1} parent=1 // pred_fallthru
      _
    // Predicated region
    $region30: #{tpu_custom_call.1} parent=1 // pred_check
      _
    $region31: #{tpu_custom_call.1} parent=1 // pred_check_branch
      %51 = sbr.rel (0) target = $region33
    $region32: #{tpu_custom_call.1} parent=1 // pred_region
      %52 = dma.done [#allocation5], 128
    $region33: #{tpu_custom_call.1} parent=1 // pred_fallthru
      _
    // Predicated region
    $region34: #{tpu_custom_call.1} parent=1 // pred_check
      _
    $region35: #{tpu_custom_call.1} parent=1 // pred_check_branch
      %54 = sbr.rel (0) target = $region37
    $region36: #{tpu_custom_call.1} parent=1 // pred_region
      %55 = dma.done [#allocation7], 2048
    $region37: #{tpu_custom_call.1} parent=1 // pred_fallthru
      _
    %v56 = vld [vmem:[#allocation4] sm:$0xff]
    %v57 = vld [vmem:[#allocation6] sm:$0xff]
    %v58 = vld [vmem:[#allocation6 + $0x8] sm:$0xff]
    %v59 = vld [vmem:[#allocation6 + $0x10] sm:$0xff]
    %v60 = vld [vmem:[#allocation6 + $0x18] sm:$0xff]
    %v61 = vld [vmem:[#allocation6 + $0x20] sm:$0xff]
    %v62 = vld [vmem:[#allocation6 + $0x28] sm:$0xff]
    %v63 = vld [vmem:[#allocation6 + $0x30] sm:$0xff]
    %v64 = vld [vmem:[#allocation6 + $0x38] sm:$0xff]
    %v65 = vld [vmem:[#allocation6 + $0x40] sm:$0xff]
    %v66 = vld [vmem:[#allocation6 + $0x48] sm:$0xff]
    %v67 = vld [vmem:[#allocation6 + $0x50] sm:$0xff]
    %v68 = vld [vmem:[#allocation6 + $0x58] sm:$0xff]
    %v69 = vld [vmem:[#allocation6 + $0x60] sm:$0xff]
    %v70 = vld [vmem:[#allocation6 + $0x68] sm:$0xff]
    %v71 = vld [vmem:[#allocation6 + $0x70] sm:$0xff]
    %v72 = vld [vmem:[#allocation6 + $0x78] sm:$0xff]
    %73 = vmatprep.subr.mxu0 0.0
    %74 = vmatpush1.msra.mxu0 %v57
    %75 = vmatprep.subr.mxu0 0.0
    %76 = vmatpush1.msra.mxu0 %v58
    %77 = vmatprep.subr.mxu0 0.0
    %78 = vmatpush1.msra.mxu0 %v59
    %79 = vmatprep.subr.mxu0 0.0
    %80 = vmatpush1.msra.mxu0 %v60
    %81 = vmatprep.subr.mxu0 0.0
    %82 = vmatpush1.msra.mxu0 %v61
    %83 = vmatprep.subr.mxu0 0.0
    %84 = vmatpush1.msra.mxu0 %v62
    %85 = vmatprep.subr.mxu0 0.0
    %86 = vmatpush1.msra.mxu0 %v63
    %87 = vmatprep.subr.mxu0 0.0
    %88 = vmatpush1.msra.mxu0 %v64
    %89 = vmatprep.subr.mxu0 0.0
    %90 = vmatpush1.msra.mxu0 %v65
    %91 = vmatprep.subr.mxu0 0.0
    %92 = vmatpush1.msra.mxu0 %v66
    %93 = vmatprep.subr.mxu0 0.0
    %94 = vmatpush1.msra.mxu0 %v67
    %95 = vmatprep.subr.mxu0 0.0
    %96 = vmatpush1.msra.mxu0 %v68
    %97 = vmatprep.subr.mxu0 0.0
    %98 = vmatpush1.msra.mxu0 %v69
    %99 = vmatprep.subr.mxu0 0.0
    %100 = vmatpush1.msra.mxu0 %v70
    %101 = vmatprep.subr.mxu0 0.0
    %102 = vmatpush1.msra.mxu0 %v71
    %103 = vmatprep.subr.mxu0 0.0
    %104 = vmatpush1.msra.mxu0 %v72
    %105 = vmatprep.subr.mxu0 0.0
    %106 = vmatpush1.msra.mxu0 0.0
    %107 = vmatprep.subr.mxu0 0.0
    %108 = vmatpush1.msra.mxu0 0.0
    %109 = vmatprep.subr.mxu0 0.0
    %110 = vmatpush1.msra.mxu0 0.0
    %111 = vmatprep.subr.mxu0 0.0
    %112 = vmatpush1.msra.mxu0 0.0
    %113 = vmatprep.subr.mxu0 0.0
    %114 = vmatpush1.msra.mxu0 0.0
    %115 = vmatprep.subr.mxu0 0.0
    %116 = vmatpush1.msra.mxu0 0.0
    %117 = vmatprep.subr.mxu0 0.0
    %118 = vmatpush1.msra.mxu0 0.0
    %119 = vmatprep.subr.mxu0 0.0
    %120 = vmatpush1.msra.mxu0 0.0
    %121 = vmatprep.subr.mxu0 0.0
    %122 = vmatpush1.msra.mxu0 0.0
    %123 = vmatprep.subr.mxu0 0.0
    %124 = vmatpush1.msra.mxu0 0.0
    %125 = vmatprep.subr.mxu0 0.0
    %126 = vmatpush1.msra.mxu0 0.0
    %127 = vmatprep.subr.mxu0 0.0
    %128 = vmatpush1.msra.mxu0 0.0
    %129 = vmatprep.subr.mxu0 0.0
    %130 = vmatpush1.msra.mxu0 0.0
    %131 = vmatprep.subr.mxu0 0.0
    %132 = vmatpush1.msra.mxu0 0.0
    %133 = vmatprep.subr.mxu0 0.0
    %134 = vmatpush1.msra.mxu0 0.0
    %135 = vmatprep.subr.mxu0 0.0
    %136 = vmatpush1.msra.mxu0 0.0
    %137 = vmatprep.mubr.f32.mxu0 0.0
    %138 = vmatmul.mubr.f32.gmra.mrb[0].mxu0 %v56
    %v139 = vpop.f32.mrb[0].mxu0
    %v140 = vadd.f32 0.0, %v139
    %v141 = vpop.f32.mrb[0].mxu0
    %142 = vdwg.mxu0
    %v143 = vrot.slane %v140, 4
    %v144 = vadd.f32 %v140, %v143
    %v145 = vrot.slane %v144, 2
    %v146 = vadd.f32 %v144, %v145
    %v147 = vrot.slane %v146, 1
    %v148 = vadd.f32 %v146, %v147
    %v149 = vrcp.pop 8.0
    %v150 = vmul.f32 %v148, %v149
    %v151 = vsub.f32 %v140, %v150
    %v152 = vmul.f32 %v151, %v151
    %v153 = vrot.slane %v152, 4
    %v154 = vadd.f32 %v152, %v153
    %v155 = vrot.slane %v154, 2
    %v156 = vadd.f32 %v154, %v155
    %v157 = vrot.slane %v156, 1
    %v158 = vadd.f32 %v156, %v157
    %v159 = vmul.f32 %v158, %v149
    %v160 = vadd.f32 %v159, 1e-05
    %v161 = vrsqrt.pop %v160
    %v162 = vmul.f32 %v151, %v161
    %v163 = vld [vmem:[%s2] sm:$0x1]
    %v165 = vlaneseq
    %v166 = vshrl.u32 %v165, 7
    %v167 = vsub.s32 0, %v166
    %v168 = vrot.slane %v163, %v167
    %v170 = vmul.f32 %v162, %v168
    %v171 = vld [vmem:[%s3] sm:$0x1]
    %v173 = vlaneseq
    %v174 = vshrl.u32 %v173, 7
    %v175 = vsub.s32 0, %v174
    %v176 = vrot.slane %v171, %v175
    %v178 = vadd.f32 %v170, %v176
    %v179 = vmax.f32 %v178, 0.0
    %v180 = vld [vmem:[%s4] sm:$0x1]
    %v182 = vlaneseq
    %v183 = vshrl.u32 %v182, 7
    %v184 = vsub.s32 0, %v183
    %v185 = vrot.slane %v180, %v184
    %v187 = vmul.f32 %v179, %v185
    %188 = vadd.xlane.f32.xlu0 %v187
    %v189 = vpop.xlane.xlu0 %188
    %v190 = vrot.slane %v189, 4
    %v191 = vadd.f32 %v189, %v190
    %v192 = vrot.slane %v191, 2
    %v193 = vadd.f32 %v191, %v192
    %v194 = vrot.slane %v193, 1
    %v195 = vadd.f32 %v193, %v194
    %v196 = vmul.f32 %v195, %v149
    %v197 = vsub.f32 %v189, %v196
    %v198 = vmul.f32 %v197, %v197
    %v199 = vrot.slane %v198, 4
    %v200 = vadd.f32 %v198, %v199
    %v201 = vrot.slane %v200, 2
    %v202 = vadd.f32 %v200, %v201
    %v203 = vrot.slane %v202, 1
    %v204 = vadd.f32 %v202, %v203
    %v205 = vmul.f32 %v204, %v149
    %v206 = vadd.f32 %v205, 1e-05
    %v207 = vrsqrt.pop %v206
    %v208 = vmul.f32 %v197, %v207
    %v209 = vld [vmem:[#allocation2] sm:$0x1]
    %v211 = vlaneseq
    %v212 = vshrl.u32 %v211, 7
    %v213 = vsub.s32 0, %v212
    %v214 = vrot.slane %v209, %v213
    %v216 = vmul.f32 %v208, %v214
    %v217 = vld [vmem:[#allocation3] sm:$0x1]
    %v219 = vlaneseq
    %v220 = vshrl.u32 %v219, 7
    %v221 = vsub.s32 0, %v220
    %v222 = vrot.slane %v217, %v221
    %v224 = vadd.f32 %v216, %v222
    %v225 = vxor.u32 %v224, 2147483648
    %v226 = vmul.f32 %v225, 1.442695
    %v227 = vpow.pop %v226
    %v228 = vadd.f32 %v227, 1.0
    %v229 = vrcp.pop %v228
    %v230 = vmul.f32 1.0, %v229
    %vm231 = vcmask 7168
    %232 = vst.msk [vmem:[%s7] sm:$0xff] %vm231, %v230
    // Predicated region
    $region38: #{tpu_custom_call.1} parent=1 // pred_check
      _
    $region39: #{tpu_custom_call.1} parent=1 // pred_check_branch
      %234 = sbr.rel (0) target = $region41
    $region40: #{tpu_custom_call.1} parent=1 // pred_region
      _
    $region41: #{tpu_custom_call.1} parent=1 // pred_fallthru
      _
    // Predicated region
    $region42: #{tpu_custom_call.1} parent=1 // pred_check
      _
    $region43: #{tpu_custom_call.1} parent=1 // pred_check_branch
      %236 = sbr.rel (0) target = $region45
    $region44: #{tpu_custom_call.1} parent=1 // pred_region
      _
    $region45: #{tpu_custom_call.1} parent=1 // pred_fallthru
      _
    %237 = vsyncpa [#allocation5], 1
    %238 = vsyncpa [#allocation7], 1

</llo_original>
